<compile_context>
chip_gen: v7x
topology: tpu7x:2x2x1
jax: 0.10.0
libtpu: 0.0.40
codegen_flags: <defaults>
</compile_context>

<pallas_src>
import functools

import jax
import jax.numpy as jnp
from jax.experimental import pallas as pl
from jax.experimental.pallas import tpu as pltpu

_LANE = 128
_SUBLANE = 8


def _round_up(n, m):
    return (n + m - 1) // m * m


def _apply_act(y, act):
    if act == "relu":
        return jnp.maximum(y, 0.0)
    if act == "leaky_relu":
        return jnp.where(y > 0, y, 0.01 * y)
    if act == "tanh":
        return jnp.tanh(y)
    raise ValueError(f"unsupported activation: {act}")


# ----------------------------- fused kernel ----------------------------------

def _fused_decoder_kernel(x_ref, *refs, layer_kinds, act):
    """Runs every layer of the decoder on one batch tile, fully in VMEM.

    refs = (w0, b0, w1, b1, ..., wf, bf, out_ref)
      - "proj"  layer: w is [Kp, 2*Np] (main | shortcut concatenated), b is [1, 2*Np]
      - "ident" layer: w is [Kp, Np],  y = act(x@w+b) + x
      - "final" layer: w is [Kp, Np],  y = x@w+b (no act, no residual)
    All padded columns/rows are zero, so padding is mathematically inert.
    """
    o_ref = refs[-1]
    prefs = refs[:-1]
    h = x_ref[...].astype(jnp.float32)
    idx = 0
    for kind in layer_kinds:
        w = prefs[idx][...]          # bf16, padded
        b = prefs[idx + 1][...]      # f32, padded
        idx += 2
        z = jnp.dot(h.astype(jnp.bfloat16), w,
                    preferred_element_type=jnp.float32) + b
        if kind == "proj":
            p = w.shape[1] // 2
            h = _apply_act(z[:, :p], act) + z[:, p:]
        elif kind == "ident":
            h = _apply_act(z, act) + h
        else:  # "final"
            h = z
    o_ref[...] = h.astype(o_ref.dtype)


# --------------------------- parameter handling -------------------------------

def init_decoder_params(key, embedding_dim, decompress_dims, output_dim):
    """Deterministic init; weights stored [in, out] (== PyTorch W.T), f32."""
    params = []
    dim = embedding_dim
    for item in decompress_dims:
        key, k1, k2, k3, k4 = jax.random.split(key, 5)
        scale = 1.0 / jnp.sqrt(jnp.float32(dim))
        layer = {
            "w": jax.random.uniform(k1, (dim, item), jnp.float32, -scale, scale),
            "b": jax.random.uniform(k2, (1, item), jnp.float32, -scale, scale),
        }
        if dim != item:  # projection shortcut
            layer["ws"] = jax.random.uniform(k3, (dim, item), jnp.float32, -scale, scale)
            layer["bs"] = jax.random.uniform(k4, (1, item), jnp.float32, -scale, scale)
        params.append(layer)
        dim = item
    key, k1, k2 = jax.random.split(key, 3)
    scale = 1.0 / jnp.sqrt(jnp.float32(dim))
    params.append({
        "w": jax.random.uniform(k1, (dim, output_dim), jnp.float32, -scale, scale),
        "b": jax.random.uniform(k2, (1, output_dim), jnp.float32, -scale, scale),
    })
    return params


def prepare_decoder_params(params, embedding_dim, decompress_dims, output_dim):
    """One-time prep: pad features to 128 lanes, fuse W/Ws of projection blocks,
    cast weights to bf16 (biases stay f32). Returns (flat_params, layer_kinds)."""
    prepared = []
    kinds = []

    def _pad_w(w, din, dout, pin, pout):
        return jnp.zeros((pin, pout), jnp.float32).at[:din, :dout].set(w)

    def _pad_b(b, dout, pout):
        return jnp.zeros((1, pout), jnp.float32).at[:, :dout].set(b)

    dim = embedding_dim
    for layer, item in zip(params[:-1], decompress_dims):
        pin, pout = _round_up(dim, _LANE), _round_up(item, _LANE)
        w = _pad_w(layer["w"], dim, item, pin, pout)
        b = _pad_b(layer["b"], item, pout)
        if "ws" in layer:
            ws = _pad_w(layer["ws"], dim, item, pin, pout)
            bs = _pad_b(layer["bs"], item, pout)
            prepared += [jnp.concatenate([w, ws], axis=1).astype(jnp.bfloat16),
                         jnp.concatenate([b, bs], axis=1)]
            kinds.append("proj")
        else:
            prepared += [w.astype(jnp.bfloat16), b]
            kinds.append("ident")
        dim = item

    final = params[-1]
    pin, pout = _round_up(dim, _LANE), _round_up(output_dim, _LANE)
    prepared += [_pad_w(final["w"], dim, output_dim, pin, pout).astype(jnp.bfloat16),
                 _pad_b(final["b"], output_dim, pout)]
    kinds.append("final")
    return prepared, tuple(kinds)


# ------------------------------- forward --------------------------------------

def decoder_forward(x, prepared, kinds, output_dim, activation="relu",
                    batch_tile=256):
    """Single fused pallas_call over the whole decoder, gridded over batch."""
    B, d_in = x.shape
    pin = prepared[0].shape[0]           # padded input width of first layer
    pout = prepared[-2].shape[1]         # padded width of final layer output

    # Pad features (lane-dense) and batch (tile multiple).
    x_p = jnp.pad(x, ((0, 0), (0, pin - d_in)))
    tb = min(batch_tile, _round_up(B, _SUBLANE))
    b_pad = _round_up(B, tb)
    if b_pad != B:
        x_p = jnp.pad(x_p, ((0, b_pad - B), (0, 0)))

    in_specs = [pl.BlockSpec((tb, pin), lambda i: (i, 0))]
    for p in prepared:
        # Constant index_map -> weights/biases stay resident across grid steps.
        in_specs.append(pl.BlockSpec(p.shape, lambda i: (0, 0)))
    out_specs = pl.BlockSpec((tb, pout), lambda i: (i, 0))

    kern = functools.partial(_fused_decoder_kernel, layer_kinds=kinds,
                             act=activation)
    out = pl.pallas_call(
        kern,
        out_shape=jax.ShapeDtypeStruct((b_pad, pout), jnp.float32),
        grid=(b_pad // tb,),
        in_specs=in_specs,
        out_specs=out_specs,
        compiler_params=pltpu.CompilerParams(
            dimension_semantics=("parallel",)),
    )(x_p, *prepared)
    return out[:B, :output_dim]


# Pure-JAX reference (mirrors the kernel's bf16-operand / f32-accumulate matmuls).
def decoder_forward_ref(x, params, activation="relu"):
    def mm(a, w):
        return jnp.dot(a.astype(jnp.bfloat16), w.astype(jnp.bfloat16),
                       preferred_element_type=jnp.float32)

    out = x
    for layer in params[:-1]:
        y = _apply_act(mm(out, layer["w"]) + layer["b"], activation)
        if "ws" in layer:
            y = y + (mm(out, layer["ws"]) + layer["bs"])
        else:
            y = y + out
        out = y
    final = params[-1]
    return mm(out, final["w"]) + final["b"]


if __name__ == "__main__":
    embedding_dim = 32
    decompress_dims = [64, 64]   # first block: projection shortcut, second: identity
    output_dim = 16
    batch = 8

    key = jax.random.PRNGKey(0)
    kx, kp = jax.random.split(key)
    x = jax.random.normal(kx, (batch, embedding_dim), jnp.float32)
    params = init_decoder_params(kp, embedding_dim, decompress_dims, output_dim)
    prepared, kinds = prepare_decoder_params(
        params, embedding_dim, decompress_dims, output_dim)

    out = decoder_forward(x, prepared, kinds, output_dim, activation="relu")
    out = jax.block_until_ready(out)

    ref = decoder_forward_ref(x, params, activation="relu")
    assert out.shape == (batch, output_dim)
    assert jnp.allclose(out, ref, atol=1e-2, rtol=1e-2), (
        float(jnp.max(jnp.abs(out - ref))))

    print("KERNEL_OK")
</pallas_src>

<mosaic_0001>
module attributes {stable_mosaic.version = 11 : i64} {
  func.func @_fused_decoder_kernel(%arg0: i32, %arg1: memref<8x128xf32, #tpu.memory_space<vmem>>, %arg2: memref<128x256xbf16, #tpu.memory_space<vmem>>, %arg3: memref<1x256xf32, #tpu.memory_space<vmem>>, %arg4: memref<128x128xbf16, #tpu.memory_space<vmem>>, %arg5: memref<1x128xf32, #tpu.memory_space<vmem>>, %arg6: memref<128x128xbf16, #tpu.memory_space<vmem>>, %arg7: memref<1x128xf32, #tpu.memory_space<vmem>>, %arg8: memref<8x128xf32, #tpu.memory_space<vmem>>) attributes {dimension_semantics = [#tpu.dimension_semantics<parallel>], iteration_bounds = array<i64: 1>, scalar_prefetch = 0 : i64, scratch_operands = 0 : i64, tpu.core_type = #tpu.core_type<tc>, window_params = [{transform_indices = @transform_0, window_bounds = array<i64: 8, 128>}, {pipeline_mode = #tpu.pipeline_mode<synchronous>, transform_indices = @transform_1, window_bounds = array<i64: 128, 256>}, {pipeline_mode = #tpu.pipeline_mode<synchronous>, transform_indices = @transform_2, window_bounds = array<i64: 1, 256>}, {pipeline_mode = #tpu.pipeline_mode<synchronous>, transform_indices = @transform_3, window_bounds = array<i64: 128, 128>}, {pipeline_mode = #tpu.pipeline_mode<synchronous>, transform_indices = @transform_4, window_bounds = array<i64: 1, 128>}, {pipeline_mode = #tpu.pipeline_mode<synchronous>, transform_indices = @transform_5, window_bounds = array<i64: 128, 128>}, {pipeline_mode = #tpu.pipeline_mode<synchronous>, transform_indices = @transform_6, window_bounds = array<i64: 1, 128>}, {transform_indices = @transform_7, window_bounds = array<i64: 8, 128>}]} {
    %c0 = arith.constant 0 : index
    %c0_0 = arith.constant 0 : index
    %0 = vector.load %arg1[%c0, %c0_0] : memref<8x128xf32, #tpu.memory_space<vmem>>, vector<8x128xf32>
    %c0_1 = arith.constant 0 : index
    %c0_2 = arith.constant 0 : index
    %1 = vector.load %arg2[%c0_1, %c0_2] : memref<128x256xbf16, #tpu.memory_space<vmem>>, vector<128x256xbf16>
    %c0_3 = arith.constant 0 : index
    %c0_4 = arith.constant 0 : index
    %2 = vector.load %arg3[%c0_3, %c0_4] : memref<1x256xf32, #tpu.memory_space<vmem>>, vector<1x256xf32>
    %3 = arith.truncf %0 : vector<8x128xf32> to vector<8x128xbf16>
    %cst = arith.constant dense<0.000000e+00> : vector<8x256xf32>
    %4 = tpu.matmul %3, %1, %cst {dimension_numbers = #tpu.dot_dimension_numbers<[1], [0], [0], [1], [0, 0, 1, 1], [], []>} : vector<8x128xbf16>, vector<128x256xbf16>, vector<8x256xf32> -> vector<8x256xf32>
    %5 = vector.broadcast %2 : vector<1x256xf32> to vector<8x256xf32>
    %6 = arith.addf %4, %5 : vector<8x256xf32>
    %7 = vector.extract_strided_slice %6 {offsets = [0, 0], sizes = [8, 128], strides = [1, 1]} : vector<8x256xf32> to vector<8x128xf32>
    %cst_5 = arith.constant 0.000000e+00 : f32
    %8 = vector.broadcast %cst_5 : f32 to vector<8x128xf32>
    %9 = arith.maximumf %7, %8 : vector<8x128xf32>
    %10 = vector.extract_strided_slice %6 {offsets = [0, 128], sizes = [8, 128], strides = [1, 1]} : vector<8x256xf32> to vector<8x128xf32>
    %11 = arith.addf %9, %10 : vector<8x128xf32>
    %c0_6 = arith.constant 0 : index
    %c0_7 = arith.constant 0 : index
    %12 = vector.load %arg4[%c0_6, %c0_7] : memref<128x128xbf16, #tpu.memory_space<vmem>>, vector<128x128xbf16>
    %c0_8 = arith.constant 0 : index
    %c0_9 = arith.constant 0 : index
    %13 = vector.load %arg5[%c0_8, %c0_9] : memref<1x128xf32, #tpu.memory_space<vmem>>, vector<1x128xf32>
    %14 = arith.truncf %11 : vector<8x128xf32> to vector<8x128xbf16>
    %cst_10 = arith.constant dense<0.000000e+00> : vector<8x128xf32>
    %15 = tpu.matmul %14, %12, %cst_10 {dimension_numbers = #tpu.dot_dimension_numbers<[1], [0], [0], [1], [0, 0, 1, 1], [], []>} : vector<8x128xbf16>, vector<128x128xbf16>, vector<8x128xf32> -> vector<8x128xf32>
    %16 = vector.broadcast %13 : vector<1x128xf32> to vector<8x128xf32>
    %17 = arith.addf %15, %16 : vector<8x128xf32>
    %cst_11 = arith.constant 0.000000e+00 : f32
    %18 = vector.broadcast %cst_11 : f32 to vector<8x128xf32>
    %19 = arith.maximumf %17, %18 : vector<8x128xf32>
    %20 = arith.addf %19, %11 : vector<8x128xf32>
    %c0_12 = arith.constant 0 : index
    %c0_13 = arith.constant 0 : index
    %21 = vector.load %arg6[%c0_12, %c0_13] : memref<128x128xbf16, #tpu.memory_space<vmem>>, vector<128x128xbf16>
    %c0_14 = arith.constant 0 : index
    %c0_15 = arith.constant 0 : index
    %22 = vector.load %arg7[%c0_14, %c0_15] : memref<1x128xf32, #tpu.memory_space<vmem>>, vector<1x128xf32>
    %23 = arith.truncf %20 : vector<8x128xf32> to vector<8x128xbf16>
    %cst_16 = arith.constant dense<0.000000e+00> : vector<8x128xf32>
    %24 = tpu.matmul %23, %21, %cst_16 {dimension_numbers = #tpu.dot_dimension_numbers<[1], [0], [0], [1], [0, 0, 1, 1], [], []>} : vector<8x128xbf16>, vector<128x128xbf16>, vector<8x128xf32> -> vector<8x128xf32>
    %25 = vector.broadcast %22 : vector<1x128xf32> to vector<8x128xf32>
    %26 = arith.addf %24, %25 : vector<8x128xf32>
    %c0_17 = arith.constant 0 : index
    %c0_18 = arith.constant 0 : index
    %27 = vector.load %arg8[%c0_17, %c0_18] : memref<8x128xf32, #tpu.memory_space<vmem>>, vector<8x128xf32>
    tpu.vector_store %arg8[%c0_17, %c0_18], %26 {strides = array<i32>} : memref<8x128xf32, #tpu.memory_space<vmem>>, vector<8x128xf32>,
    return
  }
  func.func @transform_0(%arg0: i32) -> (i32, i32) {
    %c0_i32 = arith.constant 0 : i32
    %c0_i32_0 = arith.constant 0 : i32
    return %arg0, %c0_i32 : i32, i32
  }
  func.func @transform_1(%arg0: i32) -> (i32, i32) {
    %c0_i32 = arith.constant 0 : i32
    %c0_i32_0 = arith.constant 0 : i32
    %c0_i32_1 = arith.constant 0 : i32
    return %c0_i32, %c0_i32_0 : i32, i32
  }
  func.func @transform_2(%arg0: i32) -> (i32, i32) {
    %c0_i32 = arith.constant 0 : i32
    %c0_i32_0 = arith.constant 0 : i32
    %c0_i32_1 = arith.constant 0 : i32
    return %c0_i32, %c0_i32_0 : i32, i32
  }
  func.func @transform_3(%arg0: i32) -> (i32, i32) {
    %c0_i32 = arith.constant 0 : i32
    %c0_i32_0 = arith.constant 0 : i32
    %c0_i32_1 = arith.constant 0 : i32
    return %c0_i32, %c0_i32_0 : i32, i32
  }
  func.func @transform_4(%arg0: i32) -> (i32, i32) {
    %c0_i32 = arith.constant 0 : i32
    %c0_i32_0 = arith.constant 0 : i32
    %c0_i32_1 = arith.constant 0 : i32
    return %c0_i32, %c0_i32_0 : i32, i32
  }
  func.func @transform_5(%arg0: i32) -> (i32, i32) {
    %c0_i32 = arith.constant 0 : i32
    %c0_i32_0 = arith.constant 0 : i32
    %c0_i32_1 = arith.constant 0 : i32
    return %c0_i32, %c0_i32_0 : i32, i32
  }
  func.func @transform_6(%arg0: i32) -> (i32, i32) {
    %c0_i32 = arith.constant 0 : i32
    %c0_i32_0 = arith.constant 0 : i32
    %c0_i32_1 = arith.constant 0 : i32
    return %c0_i32, %c0_i32_0 : i32, i32
  }
  func.func @transform_7(%arg0: i32) -> (i32, i32) {
    %c0_i32 = arith.constant 0 : i32
    %c0_i32_0 = arith.constant 0 : i32
    return %arg0, %c0_i32 : i32, i32
  }
}

</mosaic_0001>

<llo_original>
// kernel: tpu_custom_call.1
$region0: #{tpu_custom_call.1}
  #allocation0 [shape = 'u32[]', space=smem, size = 0x4, offset = 0x4, fixed_abs, tag = 'smem constant byte address 0x4 - core index']
  #allocation1 [shape = 'u32[144,128]{1,0:T(1,128)}', space=vmem, size = 0x12000, scoped, tag = 'internal scratch']
  %s0 = inlined_call_operand.hbm [shape: f32[8,128], index: 0, kind: input, shape index: {}]
  %s1 = inlined_call_operand.hbm [shape: bf16[128,256], index: 1, kind: input, shape index: {}]
  %s2 = inlined_call_operand.vmem [shape: f32[1,256], index: 2, kind: input, shape index: {}]
  %s3 = inlined_call_operand.hbm [shape: bf16[128,128], index: 3, kind: input, shape index: {}]
  %s4 = inlined_call_operand.vmem [shape: f32[1,128], index: 4, kind: input, shape index: {}]
  %s5 = inlined_call_operand.hbm [shape: bf16[128,128], index: 5, kind: input, shape index: {}]
  %s6 = inlined_call_operand.vmem [shape: f32[1,128], index: 6, kind: input, shape index: {}]
  %s7 = inlined_call_operand.hbm [shape: f32[8,128], index: 7, kind: output, shape index: {}]
  %s8 = sld [smem:[#allocation0]]
  $region54: #{tpu_custom_call.1} parent=0
    _
  %s10 = ssub.s32 1, %s8
  %s11 = scalar_select 0, %s10, %s8
  $region1: #{tpu_custom_call.1} parent=0
    #allocation2 [shape = 'u8[4096]{0}', space=vmem, size = 0x1000, scoped, tag = 'input window, operand 0, single buffered']
    #allocation3 [shape = 's32[1]{0}', space=sflag, size = 0x4, scoped, tag = 'scoped memory for tpu_custom_call.1']
    #allocation4 [shape = 's32[1]{0}', space=sflag, size = 0x4, scoped, tag = 'scoped memory for tpu_custom_call.1']
    #allocation5 [shape = 'u8[65536]{0}', space=vmem, size = 0x10000, scoped, tag = 'input window, operand 1, single buffered']
    #allocation6 [shape = 's32[1]{0}', space=sflag, size = 0x4, scoped, tag = 'scoped memory for tpu_custom_call.1']
    #allocation7 [shape = 'u8[32768]{0}', space=vmem, size = 0x8000, scoped, tag = 'input window, operand 3, single buffered']
    #allocation8 [shape = 'u8[32768]{0}', space=vmem, size = 0x8000, scoped, tag = 'input window, operand 5, single buffered']
    #allocation9 [shape = 's32[1]{0}', space=sflag, size = 0x4, scoped, tag = 'scoped memory for tpu_custom_call.1']
    #allocation10 [shape = 'u8[4096]{0}', space=vmem, size = 0x1000, scoped, tag = 'output window, operand 0, single buffered']
    %12 = vsyncpa [#allocation3], 0
    %13 = vsyncpa [#allocation6], 0
    %14 = vsyncpa [#allocation9], 0
    %15 = vsyncpa [#allocation4], 0
    // Predicated region
    $region2: #{tpu_custom_call.1} parent=1 // pred_check
      _
    $region3: #{tpu_custom_call.1} parent=1 // pred_check_branch
      %17 = sbr.rel (0) target = $region5
    $region4: #{tpu_custom_call.1} parent=1 // pred_region
      %s19 = ssub.s32 128, 128
      %20 = vsyncadd [#allocation3], %s19
      %s22 = sshll.u32 [#allocation2], 4
      %s23 = int_to_ptr.vmem [resolvable:$true] %s22
      %25 = dma.hbm_to_vmem [thread:$0]  %s0, 128, %s23, [#allocation3]
    $region5: #{tpu_custom_call.1} parent=1 // pred_fallthru
      _
    // Predicated region
    $region6: #{tpu_custom_call.1} parent=1 // pred_check
      _
    $region7: #{tpu_custom_call.1} parent=1 // pred_check_branch
      %27 = sbr.rel (0) target = $region9
    $region8: #{tpu_custom_call.1} parent=1 // pred_region
      %s29 = ssub.s32 2048, 2048
      %30 = vsyncadd [#allocation6], %s29
      %s31 = sshll.u32 [#allocation5], 4
      %s32 = int_to_ptr.vmem [resolvable:$true] %s31
      %37 = dma.hbm_to_vmem [thread:$0]  %s1, 2048, %s32, [#allocation6], 128, 128, 8
    $region9: #{tpu_custom_call.1} parent=1 // pred_fallthru
      _
    // Predicated region
    $region10: #{tpu_custom_call.1} parent=1 // pred_check
      _
    $region11: #{tpu_custom_call.1} parent=1 // pred_check_branch
      %39 = sbr.rel (0) target = $region13
    $region12: #{tpu_custom_call.1} parent=1 // pred_region
      _
    $region13: #{tpu_custom_call.1} parent=1 // pred_fallthru
      _
    // Predicated region
    $region14: #{tpu_custom_call.1} parent=1 // pred_check
      _
    $region15: #{tpu_custom_call.1} parent=1 // pred_check_branch
      %41 = sbr.rel (0) target = $region17
    $region16: #{tpu_custom_call.1} parent=1 // pred_region
      %s43 = ssub.s32 1024, 1024
      %44 = vsyncadd [#allocation6], %s43
      %s45 = sshll.u32 [#allocation7], 4
      %s46 = int_to_ptr.vmem [resolvable:$true] %s45
      %51 = dma.hbm_to_vmem [thread:$0]  %s3, 1024, %s46, [#allocation6], 64, 64, 4
    $region17: #{tpu_custom_call.1} parent=1 // pred_fallthru
      _
    // Predicated region
    $region18: #{tpu_custom_call.1} parent=1 // pred_check
      _
    $region19: #{tpu_custom_call.1} parent=1 // pred_check_branch
      %53 = sbr.rel (0) target = $region21
    $region20: #{tpu_custom_call.1} parent=1 // pred_region
      _
    $region21: #{tpu_custom_call.1} parent=1 // pred_fallthru
      _
    // Predicated region
    $region22: #{tpu_custom_call.1} parent=1 // pred_check
      _
    $region23: #{tpu_custom_call.1} parent=1 // pred_check_branch
      %55 = sbr.rel (0) target = $region25
    $region24: #{tpu_custom_call.1} parent=1 // pred_region
      %s57 = ssub.s32 1024, 1024
      %58 = vsyncadd [#allocation9], %s57
      %s59 = sshll.u32 [#allocation8], 4
      %s60 = int_to_ptr.vmem [resolvable:$true] %s59
      %65 = dma.hbm_to_vmem [thread:$0]  %s5, 1024, %s60, [#allocation9], 64, 64, 4
    $region25: #{tpu_custom_call.1} parent=1 // pred_fallthru
      _
    // Predicated region
    $region26: #{tpu_custom_call.1} parent=1 // pred_check
      _
    $region27: #{tpu_custom_call.1} parent=1 // pred_check_branch
      %67 = sbr.rel (0) target = $region29
    $region28: #{tpu_custom_call.1} parent=1 // pred_region
      _
    $region29: #{tpu_custom_call.1} parent=1 // pred_fallthru
      _
    // Predicated region
    $region30: #{tpu_custom_call.1} parent=1 // pred_check
      _
    $region31: #{tpu_custom_call.1} parent=1 // pred_check_branch
      %69 = sbr.rel (0) target = $region33
    $region32: #{tpu_custom_call.1} parent=1 // pred_region
      %70 = dma.done [#allocation3], 128
    $region33: #{tpu_custom_call.1} parent=1 // pred_fallthru
      _
    // Predicated region
    $region34: #{tpu_custom_call.1} parent=1 // pred_check
      _
    $region35: #{tpu_custom_call.1} parent=1 // pred_check_branch
      %72 = sbr.rel (0) target = $region37
    $region36: #{tpu_custom_call.1} parent=1 // pred_region
      %73 = dma.done [#allocation6], 2048
    $region37: #{tpu_custom_call.1} parent=1 // pred_fallthru
      _
    // Predicated region
    $region38: #{tpu_custom_call.1} parent=1 // pred_check
      _
    $region39: #{tpu_custom_call.1} parent=1 // pred_check_branch
      %75 = sbr.rel (0) target = $region41
    $region40: #{tpu_custom_call.1} parent=1 // pred_region
      %76 = dma.done [#allocation6], 1024
    $region41: #{tpu_custom_call.1} parent=1 // pred_fallthru
      _
    // Predicated region
    $region42: #{tpu_custom_call.1} parent=1 // pred_check
      _
    $region43: #{tpu_custom_call.1} parent=1 // pred_check_branch
      %78 = sbr.rel (0) target = $region45
    $region44: #{tpu_custom_call.1} parent=1 // pred_region
      %79 = dma.done [#allocation9], 1024
    $region45: #{tpu_custom_call.1} parent=1 // pred_fallthru
      _
    %v81 = vld [vmem:[#allocation2] sm:$0xff]
    %v82 = vld [vmem:[#allocation5] sm:$0xff]
    %v83 = vld [vmem:[#allocation5 + $0x8] sm:$0xff]
    %v84 = vld [vmem:[#allocation5 + $0x10] sm:$0xff]
    %v85 = vld [vmem:[#allocation5 + $0x18] sm:$0xff]
    %v86 = vld [vmem:[#allocation5 + $0x20] sm:$0xff]
    %v87 = vld [vmem:[#allocation5 + $0x28] sm:$0xff]
    %v88 = vld [vmem:[#allocation5 + $0x30] sm:$0xff]
    %v89 = vld [vmem:[#allocation5 + $0x38] sm:$0xff]
    %v90 = vld [vmem:[#allocation5 + $0x40] sm:$0xff]
    %v91 = vld [vmem:[#allocation5 + $0x48] sm:$0xff]
    %v92 = vld [vmem:[#allocation5 + $0x50] sm:$0xff]
    %v93 = vld [vmem:[#allocation5 + $0x58] sm:$0xff]
    %v94 = vld [vmem:[#allocation5 + $0x60] sm:$0xff]
    %v95 = vld [vmem:[#allocation5 + $0x68] sm:$0xff]
    %v96 = vld [vmem:[#allocation5 + $0x70] sm:$0xff]
    %v97 = vld [vmem:[#allocation5 + $0x78] sm:$0xff]
    %v98 = vld [vmem:[%s2] sm:$0x3]
    %v99 = vpack.c.bf16 %v81, %v81
    %v101 = vlaneseq
    %v102 = vshrl.u32 %v101, 7
    %v103 = vsub.s32 0, %v102
    %v104 = vrot.slane %v98, %v103
    %v105 = vlaneseq
    %v106 = vshrl.u32 %v105, 7
    %v107 = vsub.s32 1, %v106
    %v108 = vrot.slane %v98, %v107
    %v127 = vunpack.c.l.b16 %v82
    %v128 = vunpack.c.h.b16 %v82
    %v129 = vunpack.c.l.b16 %v83
    %v130 = vunpack.c.h.b16 %v83
    %v131 = vunpack.c.l.b16 %v84
    %v132 = vunpack.c.h.b16 %v84
    %v133 = vunpack.c.l.b16 %v85
    %v134 = vunpack.c.h.b16 %v85
    %v135 = vunpack.c.l.b16 %v86
    %v136 = vunpack.c.h.b16 %v86
    %v137 = vunpack.c.l.b16 %v87
    %v138 = vunpack.c.h.b16 %v87
    %v139 = vunpack.c.l.b16 %v88
    %v140 = vunpack.c.h.b16 %v88
    %v141 = vunpack.c.l.b16 %v89
    %v142 = vunpack.c.h.b16 %v89
    %v143 = vunpack.c.l.b16 %v90
    %v144 = vunpack.c.h.b16 %v90
    %v145 = vunpack.c.l.b16 %v91
    %v146 = vunpack.c.h.b16 %v91
    %v147 = vunpack.c.l.b16 %v92
    %v148 = vunpack.c.h.b16 %v92
    %v149 = vunpack.c.l.b16 %v93
    %v150 = vunpack.c.h.b16 %v93
    %v151 = vunpack.c.l.b16 %v94
    %v152 = vunpack.c.h.b16 %v94
    %v153 = vunpack.c.l.b16 %v95
    %v154 = vunpack.c.h.b16 %v95
    %v155 = vunpack.c.l.b16 %v96
    %v156 = vunpack.c.h.b16 %v96
    %v157 = vunpack.c.l.b16 %v97
    %v158 = vunpack.c.h.b16 %v97
    %v159 = vpack.c.b16 %v129, %v127
    %v160 = vpack.c.b16 %v130, %v128
    %v161 = vpack.c.b16 %v133, %v131
    %v162 = vpack.c.b16 %v134, %v132
    %v163 = vpack.c.b16 %v137, %v135
    %v164 = vpack.c.b16 %v138, %v136
    %v165 = vpack.c.b16 %v141, %v139
    %v166 = vpack.c.b16 %v142, %v140
    %v167 = vpack.c.b16 %v145, %v143
    %v168 = vpack.c.b16 %v146, %v144
    %v169 = vpack.c.b16 %v149, %v147
    %v170 = vpack.c.b16 %v150, %v148
    %v171 = vpack.c.b16 %v153, %v151
    %v172 = vpack.c.b16 %v154, %v152
    %v173 = vpack.c.b16 %v157, %v155
    %v174 = vpack.c.b16 %v158, %v156
    %191 = vmatprep.subr.bf16.mxu0 %v160
    %192 = vmatpush1.bf16.msra.mxu0 %v159
    %193 = vmatprep.subr.bf16.mxu0 %v162
    %194 = vmatpush1.bf16.msra.mxu0 %v161
    %195 = vmatprep.subr.bf16.mxu0 %v164
    %196 = vmatpush1.bf16.msra.mxu0 %v163
    %197 = vmatprep.subr.bf16.mxu0 %v166
    %198 = vmatpush1.bf16.msra.mxu0 %v165
    %199 = vmatprep.subr.bf16.mxu0 %v168
    %200 = vmatpush1.bf16.msra.mxu0 %v167
    %201 = vmatprep.subr.bf16.mxu0 %v170
    %202 = vmatpush1.bf16.msra.mxu0 %v169
    %203 = vmatprep.subr.bf16.mxu0 %v172
    %204 = vmatpush1.bf16.msra.mxu0 %v171
    %205 = vmatprep.subr.bf16.mxu0 %v174
    %206 = vmatpush1.bf16.msra.mxu0 %v173
    %207 = vmatprep.subr.bf16.mxu0 0
    %208 = vmatpush1.bf16.msra.mxu0 0
    %209 = vmatprep.subr.bf16.mxu0 0
    %210 = vmatpush1.bf16.msra.mxu0 0
    %211 = vmatprep.subr.bf16.mxu0 0
    %212 = vmatpush1.bf16.msra.mxu0 0
    %213 = vmatprep.subr.bf16.mxu0 0
    %214 = vmatpush1.bf16.msra.mxu0 0
    %215 = vmatprep.subr.bf16.mxu0 0
    %216 = vmatpush1.bf16.msra.mxu0 0
    %217 = vmatprep.subr.bf16.mxu0 0
    %218 = vmatpush1.bf16.msra.mxu0 0
    %219 = vmatprep.subr.bf16.mxu0 0
    %220 = vmatpush1.bf16.msra.mxu0 0
    %221 = vmatprep.subr.bf16.mxu0 0
    %222 = vmatpush1.bf16.msra.mxu0 0
    %223 = vmatprep.mubr.bf16.mxu0 0
    %224 = vmatmul.mubr.bf16.gmra.mrb[0].mxu0 %v99
    %v225 = vpop.f32.mrb[0].mxu0
    %v226 = vadd.f32 %v104, %v225
    %v227 = vpop.f32.mrb[0].mxu0
    %v228 = vadd.f32 %v108, %v227
    %v229 = vpop.f32.mrb[0].mxu0
    %v230 = vpop.f32.mrb[0].mxu0
    %231 = vdwg.mxu0
    %v232 = vmax.f32 %v226, 0.0
    %v233 = vadd.f32 %v232, %v228
    %v234 = vld [vmem:[#allocation7] sm:$0xf]
    %v235 = vld [vmem:[#allocation7 + $0x4] sm:$0xf]
    %v236 = vld [vmem:[#allocation7 + $0x8] sm:$0xf]
    %v237 = vld [vmem:[#allocation7 + $0xc] sm:$0xf]
    %v238 = vld [vmem:[#allocation7 + $0x10] sm:$0xf]
    %v239 = vld [vmem:[#allocation7 + $0x14] sm:$0xf]
    %v240 = vld [vmem:[#allocation7 + $0x18] sm:$0xf]
    %v241 = vld [vmem:[#allocation7 + $0x1c] sm:$0xf]
    %v242 = vld [vmem:[#allocation7 + $0x20] sm:$0xf]
    %v243 = vld [vmem:[#allocation7 + $0x24] sm:$0xf]
    %v244 = vld [vmem:[#allocation7 + $0x28] sm:$0xf]
    %v245 = vld [vmem:[#allocation7 + $0x2c] sm:$0xf]
    %v246 = vld [vmem:[#allocation7 + $0x30] sm:$0xf]
    %v247 = vld [vmem:[#allocation7 + $0x34] sm:$0xf]
    %v248 = vld [vmem:[#allocation7 + $0x38] sm:$0xf]
    %v249 = vld [vmem:[#allocation7 + $0x3c] sm:$0xf]
    %v250 = vld [vmem:[%s4] sm:$0x1]
    %v251 = vpack.c.bf16 %v233, %v233
    %v253 = vlaneseq
    %v254 = vshrl.u32 %v253, 7
    %v255 = vsub.s32 0, %v254
    %v256 = vrot.slane %v250, %v255
    %v274 = vunpack.c.l.b16 %v234
    %v275 = vunpack.c.l.b16 %v235
    %v276 = vunpack.c.l.b16 %v236
    %v277 = vunpack.c.l.b16 %v237
    %v278 = vunpack.c.l.b16 %v238
    %v279 = vunpack.c.l.b16 %v239
    %v280 = vunpack.c.l.b16 %v240
    %v281 = vunpack.c.l.b16 %v241
    %v282 = vunpack.c.l.b16 %v242
    %v283 = vunpack.c.l.b16 %v243
    %v284 = vunpack.c.l.b16 %v244
    %v285 = vunpack.c.l.b16 %v245
    %v286 = vunpack.c.l.b16 %v246
    %v287 = vunpack.c.l.b16 %v247
    %v288 = vunpack.c.l.b16 %v248
    %v289 = vunpack.c.l.b16 %v249
    %v290 = vpack.c.b16 %v275, %v274
    %v291 = vpack.c.b16 %v277, %v276
    %v292 = vpack.c.b16 %v279, %v278
    %v293 = vpack.c.b16 %v281, %v280
    %v294 = vpack.c.b16 %v283, %v282
    %v295 = vpack.c.b16 %v285, %v284
    %v296 = vpack.c.b16 %v287, %v286
    %v297 = vpack.c.b16 %v289, %v288
    %306 = vmatprep.subr.bf16.mxu0 0
    %307 = vmatpush1.bf16.msra.mxu0 %v290
    %308 = vmatprep.subr.bf16.mxu0 0
    %309 = vmatpush1.bf16.msra.mxu0 %v291
    %310 = vmatprep.subr.bf16.mxu0 0
    %311 = vmatpush1.bf16.msra.mxu0 %v292
    %312 = vmatprep.subr.bf16.mxu0 0
    %313 = vmatpush1.bf16.msra.mxu0 %v293
    %314 = vmatprep.subr.bf16.mxu0 0
    %315 = vmatpush1.bf16.msra.mxu0 %v294
    %316 = vmatprep.subr.bf16.mxu0 0
    %317 = vmatpush1.bf16.msra.mxu0 %v295
    %318 = vmatprep.subr.bf16.mxu0 0
    %319 = vmatpush1.bf16.msra.mxu0 %v296
    %320 = vmatprep.subr.bf16.mxu0 0
    %321 = vmatpush1.bf16.msra.mxu0 %v297
    %322 = vmatprep.subr.bf16.mxu0 0
    %323 = vmatpush1.bf16.msra.mxu0 0
    %324 = vmatprep.subr.bf16.mxu0 0
    %325 = vmatpush1.bf16.msra.mxu0 0
    %326 = vmatprep.subr.bf16.mxu0 0
    %327 = vmatpush1.bf16.msra.mxu0 0
    %328 = vmatprep.subr.bf16.mxu0 0
    %329 = vmatpush1.bf16.msra.mxu0 0
    %330 = vmatprep.subr.bf16.mxu0 0
    %331 = vmatpush1.bf16.msra.mxu0 0
    %332 = vmatprep.subr.bf16.mxu0 0
    %333 = vmatpush1.bf16.msra.mxu0 0
    %334 = vmatprep.subr.bf16.mxu0 0
    %335 = vmatpush1.bf16.msra.mxu0 0
    %336 = vmatprep.subr.bf16.mxu0 0
    %337 = vmatpush1.bf16.msra.mxu0 0
    %338 = vmatprep.mubr.bf16.mxu0 0
    %339 = vmatmul.mubr.bf16.gmra.mrb[0].mxu0 %v251
    %v340 = vpop.f32.mrb[0].mxu0
    %v341 = vadd.f32 %v256, %v340
    %v342 = vpop.f32.mrb[0].mxu0
    %v343 = vpop.f32.mrb[0].mxu0
    %v344 = vpop.f32.mrb[0].mxu0
    %345 = vdwg.mxu0
    %v346 = vmax.f32 %v341, 0.0
    %v347 = vadd.f32 %v346, %v233
    %v348 = vld [vmem:[#allocation8] sm:$0xf]
    %v349 = vld [vmem:[#allocation8 + $0x4] sm:$0xf]
    %v350 = vld [vmem:[#allocation8 + $0x8] sm:$0xf]
    %v351 = vld [vmem:[#allocation8 + $0xc] sm:$0xf]
    %v352 = vld [vmem:[#allocation8 + $0x10] sm:$0xf]
    %v353 = vld [vmem:[#allocation8 + $0x14] sm:$0xf]
    %v354 = vld [vmem:[#allocation8 + $0x18] sm:$0xf]
    %v355 = vld [vmem:[#allocation8 + $0x1c] sm:$0xf]
    %v356 = vld [vmem:[#allocation8 + $0x20] sm:$0xf]
    %v357 = vld [vmem:[#allocation8 + $0x24] sm:$0xf]
    %v358 = vld [vmem:[#allocation8 + $0x28] sm:$0xf]
    %v359 = vld [vmem:[#allocation8 + $0x2c] sm:$0xf]
    %v360 = vld [vmem:[#allocation8 + $0x30] sm:$0xf]
    %v361 = vld [vmem:[#allocation8 + $0x34] sm:$0xf]
    %v362 = vld [vmem:[#allocation8 + $0x38] sm:$0xf]
    %v363 = vld [vmem:[#allocation8 + $0x3c] sm:$0xf]
    %v364 = vld [vmem:[%s6] sm:$0x1]
    %v365 = vpack.c.bf16 %v347, %v347
    %v367 = vlaneseq
    %v368 = vshrl.u32 %v367, 7
    %v369 = vsub.s32 0, %v368
    %v370 = vrot.slane %v364, %v369
    %v388 = vunpack.c.l.b16 %v348
    %v389 = vunpack.c.l.b16 %v349
    %v390 = vunpack.c.l.b16 %v350
    %v391 = vunpack.c.l.b16 %v351
    %v392 = vunpack.c.l.b16 %v352
    %v393 = vunpack.c.l.b16 %v353
    %v394 = vunpack.c.l.b16 %v354
    %v395 = vunpack.c.l.b16 %v355
    %v396 = vunpack.c.l.b16 %v356
    %v397 = vunpack.c.l.b16 %v357
    %v398 = vunpack.c.l.b16 %v358
    %v399 = vunpack.c.l.b16 %v359
    %v400 = vunpack.c.l.b16 %v360
    %v401 = vunpack.c.l.b16 %v361
    %v402 = vunpack.c.l.b16 %v362
    %v403 = vunpack.c.l.b16 %v363
    %v404 = vpack.c.b16 %v389, %v388
    %v405 = vpack.c.b16 %v391, %v390
    %v406 = vpack.c.b16 %v393, %v392
    %v407 = vpack.c.b16 %v395, %v394
    %v408 = vpack.c.b16 %v397, %v396
    %v409 = vpack.c.b16 %v399, %v398
    %v410 = vpack.c.b16 %v401, %v400
    %v411 = vpack.c.b16 %v403, %v402
    %420 = vmatprep.subr.bf16.mxu0 0
    %421 = vmatpush1.bf16.msra.mxu0 %v404
    %422 = vmatprep.subr.bf16.mxu0 0
    %423 = vmatpush1.bf16.msra.mxu0 %v405
    %424 = vmatprep.subr.bf16.mxu0 0
    %425 = vmatpush1.bf16.msra.mxu0 %v406
    %426 = vmatprep.subr.bf16.mxu0 0
    %427 = vmatpush1.bf16.msra.mxu0 %v407
    %428 = vmatprep.subr.bf16.mxu0 0
    %429 = vmatpush1.bf16.msra.mxu0 %v408
    %430 = vmatprep.subr.bf16.mxu0 0
    %431 = vmatpush1.bf16.msra.mxu0 %v409
    %432 = vmatprep.subr.bf16.mxu0 0
    %433 = vmatpush1.bf16.msra.mxu0 %v410
    %434 = vmatprep.subr.bf16.mxu0 0
    %435 = vmatpush1.bf16.msra.mxu0 %v411
    %436 = vmatprep.subr.bf16.mxu0 0
    %437 = vmatpush1.bf16.msra.mxu0 0
    %438 = vmatprep.subr.bf16.mxu0 0
    %439 = vmatpush1.bf16.msra.mxu0 0
    %440 = vmatprep.subr.bf16.mxu0 0
    %441 = vmatpush1.bf16.msra.mxu0 0
    %442 = vmatprep.subr.bf16.mxu0 0
    %443 = vmatpush1.bf16.msra.mxu0 0
    %444 = vmatprep.subr.bf16.mxu0 0
    %445 = vmatpush1.bf16.msra.mxu0 0
    %446 = vmatprep.subr.bf16.mxu0 0
    %447 = vmatpush1.bf16.msra.mxu0 0
    %448 = vmatprep.subr.bf16.mxu0 0
    %449 = vmatpush1.bf16.msra.mxu0 0
    %450 = vmatprep.subr.bf16.mxu0 0
    %451 = vmatpush1.bf16.msra.mxu0 0
    %452 = vmatprep.mubr.bf16.mxu0 0
    %453 = vmatmul.mubr.bf16.gmra.mrb[0].mxu0 %v365
    %v454 = vpop.f32.mrb[0].mxu0
    %v455 = vadd.f32 %v370, %v454
    %v456 = vpop.f32.mrb[0].mxu0
    %v457 = vpop.f32.mrb[0].mxu0
    %v458 = vpop.f32.mrb[0].mxu0
    %459 = vdwg.mxu0
    %460 = vst [vmem:[#allocation10] sm:$0xff] %v455
    // Predicated region
    $region46: #{tpu_custom_call.1} parent=1 // pred_check
      _
    $region47: #{tpu_custom_call.1} parent=1 // pred_check_branch
      %462 = sbr.rel (0) target = $region49
    $region48: #{tpu_custom_call.1} parent=1 // pred_region
      %s464 = ssub.s32 128, 128
      %465 = vsyncadd [#allocation4], %s464
      %s467 = sshll.u32 [#allocation10], 4
      %s468 = int_to_ptr.vmem [resolvable:$true] %s467
      %470 = dma.vmem_to_hbm [thread:$0]  %s468, 128, %s7, [#allocation4]
    $region49: #{tpu_custom_call.1} parent=1 // pred_fallthru
      _
    // Predicated region
    $region50: #{tpu_custom_call.1} parent=1 // pred_check
      _
    $region51: #{tpu_custom_call.1} parent=1 // pred_check_branch
      %472 = sbr.rel (0) target = $region53
    $region52: #{tpu_custom_call.1} parent=1 // pred_region
      %473 = dma.done [#allocation4], 128
    $region53: #{tpu_custom_call.1} parent=1 // pred_fallthru
      _
    %474 = vsyncpa [#allocation3], 1
    %475 = vsyncpa [#allocation6], 1
    %476 = vsyncpa [#allocation9], 1
    %477 = vsyncpa [#allocation4], 1

</llo_original>
